<compile_context>
chip_gen: v7x
topology: tpu7x:2x2x1
jax: 0.10.0
libtpu: 0.0.40
codegen_flags: <defaults>
</compile_context>

<pallas_src>
import functools

import jax
import jax.numpy as jnp
from jax.experimental import pallas as pl
from jax.experimental.pallas import tpu as pltpu

EPS = 1e-05
SOFTPLUS_BETA = 2.0
SOFTPLUS_THRESHOLD = 20.0  # PyTorch nn.Softplus default threshold
LANE = 128


def _round_up(n, m):
    return (n + m - 1) // m * m


def _cmal_kernel(x_ref, w1_ref, b1_ref, w2_ref, b2_ref, out_ref, *,
                 mixtures, matmul_dtype):
    """One batch tile of the fused CMAL forward.

    x_ref  : (TB, D_in)    f32 (cast to matmul dtype in-register)
    w1_ref : (D_in, H_pad) matmul dtype
    b1_ref : (1, H_pad)    f32
    w2_ref : (H_pad, OUT_W) matmul dtype, heads packed contiguously in the
                            first 4*mixtures columns (zero padding after)
    b2_ref : (1, OUT_W)    f32
    out_ref: (TB, OUT_W)   f32 fused lane-dense output slab
    """
    M = mixtures

    # ---- Linear 1 + ReLU (MXU, f32 accumulation; elementwise in f32) ----
    x = x_ref[...].astype(matmul_dtype)
    h = jnp.dot(x, w1_ref[...], preferred_element_type=jnp.float32)
    h = jnp.maximum(h + b1_ref[...], 0.0)                  # (TB, H_pad) f32

    # ---- Linear 2 (single narrow output slab, heads contiguous) ----
    h2 = jnp.dot(h.astype(matmul_dtype), w2_ref[...],
                 preferred_element_type=jnp.float32)
    h2 = h2 + b2_ref[...]                                   # (TB, OUT_W) f32

    # Per-lane head id via iota comparisons (no cross-lane data movement).
    lane = jax.lax.broadcasted_iota(jnp.int32, h2.shape, dimension=1)
    is_m = lane < M
    is_b = (lane >= M) & (lane < 2 * M)
    is_t = (lane >= 2 * M) & (lane < 3 * M)
    is_p = (lane >= 3 * M) & (lane < 4 * M)

    # ---- b: softplus(beta=2) + eps (PyTorch threshold semantics) ----
    bz = SOFTPLUS_BETA * h2
    sp = jnp.where(
        bz > SOFTPLUS_THRESHOLD,
        h2,
        jnp.log1p(jnp.exp(jnp.minimum(bz, SOFTPLUS_THRESHOLD)))
        * (1.0 / SOFTPLUS_BETA),
    )
    b_act = sp + EPS

    # ---- t: scaled sigmoid ----
    t_act = (1.0 - EPS) * jax.nn.sigmoid(h2) + EPS

    # ---- p: scaled softmax restricted to the real p lanes ----
    p_masked = jnp.where(is_p, h2, -1e30)      # exclude non-p / padded lanes
    p_max = jnp.max(p_masked, axis=-1, keepdims=True)
    p_exp = jnp.exp(p_masked - p_max)          # non-p lanes -> 0
    p_sum = jnp.sum(p_exp, axis=-1, keepdims=True)
    p_act = (1.0 - EPS) * (p_exp * pl.reciprocal(p_sum, approx=True)) + EPS

    # ---- combine heads into one lane-dense f32 slab (unmasked 128-lane st) --
    out = jnp.where(is_m, h2,
          jnp.where(is_b, b_act,
          jnp.where(is_t, t_act,
          jnp.where(is_p, p_act, 0.0))))
    out_ref[...] = out


def pack_cmal_params(w1, b1, w2, b2, mixtures, *, matmul_dtype=jnp.bfloat16):
    """Pack weights/biases ONCE (hoisted out of the per-call path).

    w1 : (inputDim, H), b1 : (H,), w2 : (H, 4*mixtures), b2 : (4*mixtures,).
    Heads stay contiguous in the first 4*mixtures columns of w2_p / b2_p;
    only the lane tail (to a multiple of 128) and the hidden dim are padded.
    """
    D_in, H = w1.shape
    assert b1.shape == (H,)
    assert w2.shape == (H, 4 * mixtures)
    assert b2.shape == (4 * mixtures,)

    H_pad = _round_up(H, LANE)
    OUT_W = _round_up(4 * mixtures, LANE)

    f32 = jnp.float32
    w1_p = jnp.zeros((D_in, H_pad), f32).at[:, :H].set(w1).astype(matmul_dtype)
    b1_p = jnp.zeros((1, H_pad), f32).at[0, :H].set(b1)
    w2_p = (jnp.zeros((H_pad, OUT_W), f32)
            .at[:H, :4 * mixtures].set(w2).astype(matmul_dtype))
    b2_p = jnp.zeros((1, OUT_W), f32).at[0, :4 * mixtures].set(b2)
    return w1_p, b1_p, w2_p, b2_p


def cmal_forward(x, packed_params, mixtures, *, tile_b=None):
    """CMAL forward pass.

    x : (B, inputDim) f32.  packed_params: output of pack_cmal_params.
    Returns (m, b, t, p), each (B, mixtures) float32.
    """
    w1_p, b1_p, w2_p, b2_p = packed_params
    B, D_in = x.shape
    assert w1_p.shape[0] == D_in
    OUT_W = w2_p.shape[1]
    assert 4 * mixtures <= OUT_W
    matmul_dtype = w1_p.dtype

    # Batch tiling: tiles up to 512 rows but >= 4 grid steps when B allows,
    # so v7x's two TensorCores each get a >= 2-deep pipeline; batch padding
    # is at most tile_b - 1 rows.
    if tile_b is None:
        tile_b = min(512, _round_up(pl.cdiv(B, 4), 8))
    tile_b = max(8, _round_up(min(tile_b, _round_up(B, 8)), 8))
    B_pad = _round_up(B, tile_b)
    nsteps = B_pad // tile_b

    # x stays unpadded along features and in f32 (cast in-kernel); only pad
    # batch rows when B is not a multiple of tile_b.
    x_p = x if B_pad == B else jnp.pad(x, ((0, B_pad - B), (0, 0)))

    kernel = functools.partial(_cmal_kernel, mixtures=mixtures,
                               matmul_dtype=matmul_dtype)

    out = pl.pallas_call(
        kernel,
        out_shape=jax.ShapeDtypeStruct((B_pad, OUT_W), jnp.float32),
        grid_spec=pltpu.PrefetchScalarGridSpec(
            num_scalar_prefetch=0,
            grid=(nsteps,),
            in_specs=[
                pl.BlockSpec((tile_b, D_in), lambda i: (i, 0)),   # x tile
                # Constant (resident) operands; at these sizes their default
                # double-buffering is negligible.  At much larger H consider
                # pipeline_mode=pl.Buffered(1) to halve their VMEM on v7x.
                pl.BlockSpec(w1_p.shape, lambda i: (0, 0)),       # w1
                pl.BlockSpec(b1_p.shape, lambda i: (0, 0)),       # b1
                pl.BlockSpec(w2_p.shape, lambda i: (0, 0)),       # w2
                pl.BlockSpec(b2_p.shape, lambda i: (0, 0)),       # b2
            ],
            # Single fused, lane-dense (multiple-of-128) output slab with the
            # heads packed contiguously; the head split happens in the wrapper.
            out_specs=pl.BlockSpec((tile_b, OUT_W), lambda i: (i, 0)),
        ),
        compiler_params=pltpu.CompilerParams(
            dimension_semantics=("parallel",),
        ),
    )(x_p, w1_p, b1_p, w2_p, b2_p)

    M = mixtures
    m = out[:B, 0 * M:1 * M]
    b_out = out[:B, 1 * M:2 * M]
    t = out[:B, 2 * M:3 * M]
    p = out[:B, 3 * M:4 * M]
    return m, b_out, t, p


def reference_forward(x, w1, b1, w2, b2, mixtures, *, matmul_dtype=jnp.bfloat16):
    """Plain-JAX reference replicating the PyTorch module (same MXU dtype)."""
    md = matmul_dtype
    h = jnp.dot(x.astype(md), w1.astype(md),
                preferred_element_type=jnp.float32) + b1
    h = jnp.maximum(h, 0.0)
    h2 = jnp.dot(h.astype(md), w2.astype(md),
                 preferred_element_type=jnp.float32) + b2
    m, b, t, p = jnp.split(h2, 4, axis=-1)
    bz = SOFTPLUS_BETA * b
    sp = jnp.where(
        bz > SOFTPLUS_THRESHOLD,
        b,
        jnp.log1p(jnp.exp(jnp.minimum(bz, SOFTPLUS_THRESHOLD)))
        * (1.0 / SOFTPLUS_BETA),
    )
    b = sp + EPS
    t = (1.0 - EPS) * jax.nn.sigmoid(t) + EPS
    p = (1.0 - EPS) * jax.nn.softmax(p, axis=-1) + EPS
    return m, b, t, p


if __name__ == "__main__":
    # Small module sizes; batch large enough to exercise the multi-step
    # pipelined / megacore-friendly grid (tile_b=128 -> grid=(4,)).
    B, inputDim, hiddenDim, mixtures = 512, 32, 64, 8

    key = jax.random.PRNGKey(0)
    kx, k1, k2, k3, k4 = jax.random.split(key, 5)

    x = jax.random.normal(kx, (B, inputDim), dtype=jnp.float32)
    lim1 = 1.0 / (inputDim ** 0.5)
    lim2 = 1.0 / (hiddenDim ** 0.5)
    w1 = jax.random.uniform(k1, (inputDim, hiddenDim), jnp.float32, -lim1, lim1)
    b1 = jax.random.uniform(k2, (hiddenDim,), jnp.float32, -lim1, lim1)
    w2 = jax.random.uniform(k3, (hiddenDim, 4 * mixtures), jnp.float32, -lim2, lim2)
    b2 = jax.random.uniform(k4, (4 * mixtures,), jnp.float32, -lim2, lim2)

    # Pack weights ONCE (init-time), reuse across forward calls.
    packed = pack_cmal_params(w1, b1, w2, b2, mixtures)

    m, b, t, p = cmal_forward(x, packed, mixtures)
    jax.block_until_ready((m, b, t, p))

    # Cross-check against the plain-JAX reference (same bf16-operand matmuls).
    m_r, b_r, t_r, p_r = reference_forward(x, w1, b1, w2, b2, mixtures)
    for got, want in ((m, m_r), (b, b_r), (t, t_r), (p, p_r)):
        assert got.shape == want.shape == (B, mixtures)
        assert got.dtype == jnp.float32
        err = float(jnp.max(jnp.abs(got - want)))
        assert err < 2e-3, err

    print("KERNEL_OK")
</pallas_src>

<mosaic_0001>
module attributes {stable_mosaic.version = 11 : i64} {
  func.func @_cmal_kernel(%arg0: i32, %arg1: memref<128x32xf32, #tpu.memory_space<vmem>>, %arg2: memref<32x128xbf16, #tpu.memory_space<vmem>>, %arg3: memref<1x128xf32, #tpu.memory_space<vmem>>, %arg4: memref<128x128xbf16, #tpu.memory_space<vmem>>, %arg5: memref<1x128xf32, #tpu.memory_space<vmem>>, %arg6: memref<128x128xf32, #tpu.memory_space<vmem>>) attributes {dimension_semantics = [#tpu.dimension_semantics<parallel>], iteration_bounds = array<i64: 4>, scalar_prefetch = 0 : i64, scratch_operands = 0 : i64, tpu.core_type = #tpu.core_type<tc>, window_params = [{transform_indices = @transform_0, window_bounds = array<i64: 128, 32>}, {pipeline_mode = #tpu.pipeline_mode<synchronous>, transform_indices = @transform_1, window_bounds = array<i64: 32, 128>}, {pipeline_mode = #tpu.pipeline_mode<synchronous>, transform_indices = @transform_2, window_bounds = array<i64: 1, 128>}, {pipeline_mode = #tpu.pipeline_mode<synchronous>, transform_indices = @transform_3, window_bounds = array<i64: 128, 128>}, {pipeline_mode = #tpu.pipeline_mode<synchronous>, transform_indices = @transform_4, window_bounds = array<i64: 1, 128>}, {transform_indices = @transform_5, window_bounds = array<i64: 128, 128>}]} {
    %c0 = arith.constant 0 : index
    %c0_0 = arith.constant 0 : index
    %0 = vector.load %arg1[%c0, %c0_0] : memref<128x32xf32, #tpu.memory_space<vmem>>, vector<128x32xf32>
    %1 = arith.truncf %0 : vector<128x32xf32> to vector<128x32xbf16>
    %c0_1 = arith.constant 0 : index
    %c0_2 = arith.constant 0 : index
    %2 = vector.load %arg2[%c0_1, %c0_2] : memref<32x128xbf16, #tpu.memory_space<vmem>>, vector<32x128xbf16>
    %cst = arith.constant dense<0.000000e+00> : vector<128x128xf32>
    %3 = tpu.matmul %1, %2, %cst {dimension_numbers = #tpu.dot_dimension_numbers<[1], [0], [0], [1], [0, 0, 1, 1], [], []>} : vector<128x32xbf16>, vector<32x128xbf16>, vector<128x128xf32> -> vector<128x128xf32>
    %c0_3 = arith.constant 0 : index
    %c0_4 = arith.constant 0 : index
    %4 = vector.load %arg3[%c0_3, %c0_4] : memref<1x128xf32, #tpu.memory_space<vmem>>, vector<1x128xf32>
    %5 = vector.broadcast %4 : vector<1x128xf32> to vector<128x128xf32>
    %6 = arith.addf %3, %5 : vector<128x128xf32>
    %cst_5 = arith.constant 0.000000e+00 : f32
    %7 = vector.broadcast %cst_5 : f32 to vector<128x128xf32>
    %8 = arith.maximumf %6, %7 : vector<128x128xf32>
    %9 = arith.truncf %8 : vector<128x128xf32> to vector<128x128xbf16>
    %c0_6 = arith.constant 0 : index
    %c0_7 = arith.constant 0 : index
    %10 = vector.load %arg4[%c0_6, %c0_7] : memref<128x128xbf16, #tpu.memory_space<vmem>>, vector<128x128xbf16>
    %cst_8 = arith.constant dense<0.000000e+00> : vector<128x128xf32>
    %11 = tpu.matmul %9, %10, %cst_8 {dimension_numbers = #tpu.dot_dimension_numbers<[1], [0], [0], [1], [0, 0, 1, 1], [], []>} : vector<128x128xbf16>, vector<128x128xbf16>, vector<128x128xf32> -> vector<128x128xf32>
    %c0_9 = arith.constant 0 : index
    %c0_10 = arith.constant 0 : index
    %12 = vector.load %arg5[%c0_9, %c0_10] : memref<1x128xf32, #tpu.memory_space<vmem>>, vector<1x128xf32>
    %13 = vector.broadcast %12 : vector<1x128xf32> to vector<128x128xf32>
    %14 = arith.addf %11, %13 : vector<128x128xf32>
    %15 = tpu.iota {dimensions = array<i32: 1>} : vector<128x128xi32>
    %c8_i32 = arith.constant 8 : i32
    %16 = vector.broadcast %c8_i32 : i32 to vector<128x128xi32>
    %17 = arith.cmpi slt, %15, %16 : vector<128x128xi32>
    %c8_i32_11 = arith.constant 8 : i32
    %18 = vector.broadcast %c8_i32_11 : i32 to vector<128x128xi32>
    %19 = arith.cmpi sge, %15, %18 : vector<128x128xi32>
    %c16_i32 = arith.constant 16 : i32
    %20 = vector.broadcast %c16_i32 : i32 to vector<128x128xi32>
    %21 = arith.cmpi slt, %15, %20 : vector<128x128xi32>
    %22 = arith.andi %19, %21 : vector<128x128xi1>
    %c16_i32_12 = arith.constant 16 : i32
    %23 = vector.broadcast %c16_i32_12 : i32 to vector<128x128xi32>
    %24 = arith.cmpi sge, %15, %23 : vector<128x128xi32>
    %c24_i32 = arith.constant 24 : i32
    %25 = vector.broadcast %c24_i32 : i32 to vector<128x128xi32>
    %26 = arith.cmpi slt, %15, %25 : vector<128x128xi32>
    %27 = arith.andi %24, %26 : vector<128x128xi1>
    %c24_i32_13 = arith.constant 24 : i32
    %28 = vector.broadcast %c24_i32_13 : i32 to vector<128x128xi32>
    %29 = arith.cmpi sge, %15, %28 : vector<128x128xi32>
    %c32_i32 = arith.constant 32 : i32
    %30 = vector.broadcast %c32_i32 : i32 to vector<128x128xi32>
    %31 = arith.cmpi slt, %15, %30 : vector<128x128xi32>
    %32 = arith.andi %29, %31 : vector<128x128xi1>
    %cst_14 = arith.constant 2.000000e+00 : f32
    %33 = vector.broadcast %cst_14 : f32 to vector<128x128xf32>
    %34 = arith.mulf %33, %14 : vector<128x128xf32>
    %cst_15 = arith.constant 2.000000e+01 : f32
    %35 = vector.broadcast %cst_15 : f32 to vector<128x128xf32>
    %36 = arith.cmpf ogt, %34, %35 : vector<128x128xf32>
    %cst_16 = arith.constant 2.000000e+01 : f32
    %37 = vector.broadcast %cst_16 : f32 to vector<128x128xf32>
    %38 = arith.minimumf %34, %37 : vector<128x128xf32>
    %39 = math.exp %38 : vector<128x128xf32>
    %40 = math.log1p %39 : vector<128x128xf32>
    %cst_17 = arith.constant 5.000000e-01 : f32
    %41 = vector.broadcast %cst_17 : f32 to vector<128x128xf32>
    %42 = arith.mulf %40, %41 : vector<128x128xf32>
    %43 = arith.select %36, %14, %42 : vector<128x128xi1>, vector<128x128xf32>
    %cst_18 = arith.constant 9.99999974E-6 : f32
    %44 = vector.broadcast %cst_18 : f32 to vector<128x128xf32>
    %45 = arith.addf %43, %44 : vector<128x128xf32>
    %46 = arith.negf %14 : vector<128x128xf32>
    %47 = math.exp %46 : vector<128x128xf32>
    %cst_19 = arith.constant 1.000000e+00 : f32
    %48 = vector.broadcast %cst_19 : f32 to vector<128x128xf32>
    %49 = arith.addf %48, %47 : vector<128x128xf32>
    %50 = arith.divf %48, %49 : vector<128x128xf32>
    %cst_20 = arith.constant 0.999989986 : f32
    %51 = vector.broadcast %cst_20 : f32 to vector<128x128xf32>
    %52 = arith.mulf %51, %50 : vector<128x128xf32>
    %cst_21 = arith.constant 9.99999974E-6 : f32
    %53 = vector.broadcast %cst_21 : f32 to vector<128x128xf32>
    %54 = arith.addf %52, %53 : vector<128x128xf32>
    %cst_22 = arith.constant -1.000000e+30 : f32
    %55 = vector.broadcast %cst_22 : f32 to vector<128x128xf32>
    %56 = arith.select %32, %14, %55 : vector<128x128xi1>, vector<128x128xf32>
    %cst_23 = arith.constant dense<0xFF800000> : vector<128xf32>
    %57 = vector.multi_reduction <maximumf>, %56, %cst_23 [1] : vector<128x128xf32> to vector<128xf32>
    %58 = vector.shape_cast %57 : vector<128xf32> to vector<128x1xf32>
    %59 = vector.broadcast %58 : vector<128x1xf32> to vector<128x128xf32>
    %60 = arith.subf %56, %59 : vector<128x128xf32>
    %61 = math.exp %60 : vector<128x128xf32>
    %cst_24 = arith.constant dense<0.000000e+00> : vector<128xf32>
    %62 = vector.multi_reduction <add>, %61, %cst_24 [1] : vector<128x128xf32> to vector<128xf32>
    %63 = vector.shape_cast %62 : vector<128xf32> to vector<128x1xf32>
    %64 = tpu.reciprocal %63 {approx = true} : vector<128x1xf32> -> vector<128x1xf32>
    %65 = vector.broadcast %64 : vector<128x1xf32> to vector<128x128xf32>
    %66 = arith.mulf %61, %65 : vector<128x128xf32>
    %cst_25 = arith.constant 0.999989986 : f32
    %67 = vector.broadcast %cst_25 : f32 to vector<128x128xf32>
    %68 = arith.mulf %67, %66 : vector<128x128xf32>
    %cst_26 = arith.constant 9.99999974E-6 : f32
    %69 = vector.broadcast %cst_26 : f32 to vector<128x128xf32>
    %70 = arith.addf %68, %69 : vector<128x128xf32>
    %cst_27 = arith.constant 0.000000e+00 : f32
    %71 = vector.broadcast %cst_27 : f32 to vector<128x128xf32>
    %72 = arith.select %32, %70, %71 : vector<128x128xi1>, vector<128x128xf32>
    %73 = arith.select %27, %54, %72 : vector<128x128xi1>, vector<128x128xf32>
    %74 = arith.select %22, %45, %73 : vector<128x128xi1>, vector<128x128xf32>
    %75 = arith.select %17, %14, %74 : vector<128x128xi1>, vector<128x128xf32>
    %c0_28 = arith.constant 0 : index
    %c0_29 = arith.constant 0 : index
    %76 = vector.load %arg6[%c0_28, %c0_29] : memref<128x128xf32, #tpu.memory_space<vmem>>, vector<128x128xf32>
    tpu.vector_store %arg6[%c0_28, %c0_29], %75 {strides = array<i32>} : memref<128x128xf32, #tpu.memory_space<vmem>>, vector<128x128xf32>,
    return
  }
  func.func @transform_0(%arg0: i32) -> (i32, i32) {
    %c0_i32 = arith.constant 0 : i32
    %c0_i32_0 = arith.constant 0 : i32
    return %arg0, %c0_i32 : i32, i32
  }
  func.func @transform_1(%arg0: i32) -> (i32, i32) {
    %c0_i32 = arith.constant 0 : i32
    %c0_i32_0 = arith.constant 0 : i32
    %c0_i32_1 = arith.constant 0 : i32
    return %c0_i32, %c0_i32_0 : i32, i32
  }
  func.func @transform_2(%arg0: i32) -> (i32, i32) {
    %c0_i32 = arith.constant 0 : i32
    %c0_i32_0 = arith.constant 0 : i32
    %c0_i32_1 = arith.constant 0 : i32
    return %c0_i32, %c0_i32_0 : i32, i32
  }
  func.func @transform_3(%arg0: i32) -> (i32, i32) {
    %c0_i32 = arith.constant 0 : i32
    %c0_i32_0 = arith.constant 0 : i32
    %c0_i32_1 = arith.constant 0 : i32
    return %c0_i32, %c0_i32_0 : i32, i32
  }
  func.func @transform_4(%arg0: i32) -> (i32, i32) {
    %c0_i32 = arith.constant 0 : i32
    %c0_i32_0 = arith.constant 0 : i32
    %c0_i32_1 = arith.constant 0 : i32
    return %c0_i32, %c0_i32_0 : i32, i32
  }
  func.func @transform_5(%arg0: i32) -> (i32, i32) {
    %c0_i32 = arith.constant 0 : i32
    %c0_i32_0 = arith.constant 0 : i32
    return %arg0, %c0_i32 : i32, i32
  }
}

</mosaic_0001>

<llo_original>
// kernel: tpu_custom_call.1
$region0: #{tpu_custom_call.1}
  #allocation0 [shape = 'u32[]', space=smem, size = 0x4, offset = 0x4, fixed_abs, tag = 'smem constant byte address 0x4 - core index']
  #allocation1 [shape = 'u32[144,128]{1,0:T(1,128)}', space=vmem, size = 0x12000, scoped, tag = 'internal scratch']
  %s0 = inlined_call_operand.vmem [shape: f32[512,32], index: 0, kind: input, shape index: {}]
  %s1 = inlined_call_operand.vmem [shape: bf16[32,128], index: 1, kind: input, shape index: {}]
  %s2 = inlined_call_operand.vmem [shape: f32[1,128], index: 2, kind: input, shape index: {}]
  %s3 = inlined_call_operand.vmem [shape: bf16[128,128], index: 3, kind: input, shape index: {}]
  %s4 = inlined_call_operand.vmem [shape: f32[1,128], index: 4, kind: input, shape index: {}]
  %s5 = inlined_call_operand.hbm [shape: f32[512,128], index: 5, kind: output, shape index: {}]
  %s6 = sld [smem:[#allocation0]]
  $region53: #{tpu_custom_call.1} parent=0
    _
  %s8 = ssub.s32 1, %s6
  %s9 = scalar_select 0, %s8, %s6
  $region1: #{tpu_custom_call.1} parent=0
    #allocation2 [shape = 'u8[131072]{0}', space=vmem, size = 0x20000, scoped, tag = 'output window, operand 0']
    #allocation3 [shape = 's32[2]{0}', space=sflag, size = 0x8, scoped, tag = 'scoped memory for tpu_custom_call.1']
    %10 = vsyncpa [#allocation3], 0
    %s11 = scalar_lea.sflag [#allocation3], 1
    %12 = vsyncpa %s11, 0
    loop: start=0, step=1, limit=6
    $region2: #{tpu_custom_call.1} parent=1 // loop_pre_header
      _
    $region3: #{tpu_custom_call.1} parent=1 // loop_header
      %s14 = sphi 0, %s18
      %p15 = scmp.ge.s32.totalorder %s14, 6
      %s24 = sphi 0, %s26
      %s27 = sphi 0, %s24
      %s28 = sphi 0, %s27
      %s44 = sphi 0, %s28
      %s48 = sphi 0, %s48
      %s50 = sphi 0, %s48
      %s51 = sphi 0, %s50
      %s65 = sphi 0, %s51
      %s69 = sphi 0, %s69
      %s71 = sphi 0, %s69
      %s72 = sphi 0, %s71
      %s86 = sphi 0, %s72
      %s90 = sphi 0, %s90
      %s92 = sphi 0, %s90
      %s93 = sphi 0, %s92
      %s107 = sphi 0, %s93
      %s111 = sphi 0, %s111
      %s113 = sphi 0, %s111
      %s114 = sphi 0, %s113
      %s128 = sphi 0, %s114
      %s134 = sphi 0, %s136
      %s137 = sphi 0, %s134
      %s138 = sphi 0, %s137
      %s154 = sphi 0, %s138
    $region4: #{tpu_custom_call.1} parent=1 // loop_header_branch
      %17 = sbr.rel (%p15) target = $region8
    $region5: #{tpu_custom_call.1} parent=1 // loop_body
      %s19 = ssub.s32 %s14, 1
      %s20 = ssub.s32 %s14, 2
      %s21 = sadd.s32 %s14, 1
      %s22 = ssub.s32 %s14, %s21
      %p23 = scmp.eq.s32.totalorder %s22, 0
      %s25 = sadd.s32 %s24, 1
      %s26 = scalar_select %p23, %s24, %s25
      %p29 = pneg %p23
      %p30 = scmp.eq.s32.totalorder %s14, 3
      %p31 = por %p29, %p30
      %p32 = scmp.ne.s32.totalorder %s24, %s27
      %p33 = scmp.eq.s32.totalorder %s14, 0
      %p34 = por %p32, %p33
      %p35 = scmp.ne.s32.totalorder %s24, %s27
      %p36 = scmp.eq.s32.totalorder %s19, 3
      %p37 = por %p35, %p36
      %p38 = scmp.ne.s32.totalorder %s27, %s28
      %p39 = scmp.eq.s32.totalorder %s19, 0
      %p40 = por %p38, %p39
      %p41 = scmp.ne.s32.totalorder %s27, %s28
      %p42 = scmp.eq.s32.totalorder %s20, 3
      %p43 = por %p41, %p42
      %p45 = scmp.ne.s32.totalorder %s28, %s44
      %p46 = scmp.eq.s32.totalorder %s20, 0
      %p47 = por %p45, %p46
      %s49 = sadd.s32 %s48, 1
      %p52 = scmp.eq.s32.totalorder %s14, 3
      %p53 = scmp.ne.s32.totalorder %s48, %s50
      %p54 = scmp.eq.s32.totalorder %s14, 0
      %p55 = por %p53, %p54
      %p56 = scmp.ne.s32.totalorder %s48, %s50
      %p57 = scmp.eq.s32.totalorder %s19, 3
      %p58 = por %p56, %p57
      %p59 = scmp.ne.s32.totalorder %s50, %s51
      %p60 = scmp.eq.s32.totalorder %s19, 0
      %p61 = por %p59, %p60
      %p62 = scmp.ne.s32.totalorder %s50, %s51
      %p63 = scmp.eq.s32.totalorder %s20, 3
      %p64 = por %p62, %p63
      %p66 = scmp.ne.s32.totalorder %s51, %s65
      %p67 = scmp.eq.s32.totalorder %s20, 0
      %p68 = por %p66, %p67
      %s70 = sadd.s32 %s69, 1
      %p73 = scmp.eq.s32.totalorder %s14, 3
      %p74 = scmp.ne.s32.totalorder %s69, %s71
      %p75 = scmp.eq.s32.totalorder %s14, 0
      %p76 = por %p74, %p75
      %p77 = scmp.ne.s32.totalorder %s69, %s71
      %p78 = scmp.eq.s32.totalorder %s19, 3
      %p79 = por %p77, %p78
      %p80 = scmp.ne.s32.totalorder %s71, %s72
      %p81 = scmp.eq.s32.totalorder %s19, 0
      %p82 = por %p80, %p81
      %p83 = scmp.ne.s32.totalorder %s71, %s72
      %p84 = scmp.eq.s32.totalorder %s20, 3
      %p85 = por %p83, %p84
      %p87 = scmp.ne.s32.totalorder %s72, %s86
      %p88 = scmp.eq.s32.totalorder %s20, 0
      %p89 = por %p87, %p88
      %s91 = sadd.s32 %s90, 1
      %p94 = scmp.eq.s32.totalorder %s14, 3
      %p95 = scmp.ne.s32.totalorder %s90, %s92
      %p96 = scmp.eq.s32.totalorder %s14, 0
      %p97 = por %p95, %p96
      %p98 = scmp.ne.s32.totalorder %s90, %s92
      %p99 = scmp.eq.s32.totalorder %s19, 3
      %p100 = por %p98, %p99
      %p101 = scmp.ne.s32.totalorder %s92, %s93
      %p102 = scmp.eq.s32.totalorder %s19, 0
      %p103 = por %p101, %p102
      %p104 = scmp.ne.s32.totalorder %s92, %s93
      %p105 = scmp.eq.s32.totalorder %s20, 3
      %p106 = por %p104, %p105
      %p108 = scmp.ne.s32.totalorder %s93, %s107
      %p109 = scmp.eq.s32.totalorder %s20, 0
      %p110 = por %p108, %p109
      %s112 = sadd.s32 %s111, 1
      %p115 = scmp.eq.s32.totalorder %s14, 3
      %p116 = scmp.ne.s32.totalorder %s111, %s113
      %p117 = scmp.eq.s32.totalorder %s14, 0
      %p118 = por %p116, %p117
      %p119 = scmp.ne.s32.totalorder %s111, %s113
      %p120 = scmp.eq.s32.totalorder %s19, 3
      %p121 = por %p119, %p120
      %p122 = scmp.ne.s32.totalorder %s113, %s114
      %p123 = scmp.eq.s32.totalorder %s19, 0
      %p124 = por %p122, %p123
      %p125 = scmp.ne.s32.totalorder %s113, %s114
      %p126 = scmp.eq.s32.totalorder %s20, 3
      %p127 = por %p125, %p126
      %p129 = scmp.ne.s32.totalorder %s114, %s128
      %p130 = scmp.eq.s32.totalorder %s20, 0
      %p131 = por %p129, %p130
      %s132 = ssub.s32 %s14, %s21
      %p133 = scmp.eq.s32.totalorder %s132, 0
      %s135 = sadd.s32 %s134, 1
      %s136 = scalar_select %p133, %s134, %s135
      %p139 = pneg %p133
      %p140 = scmp.eq.s32.totalorder %s14, 3
      %p141 = por %p139, %p140
      %p142 = scmp.ne.s32.totalorder %s134, %s137
      %p143 = scmp.eq.s32.totalorder %s14, 0
      %p144 = por %p142, %p143
      %p145 = scmp.ne.s32.totalorder %s134, %s137
      %p146 = scmp.eq.s32.totalorder %s19, 3
      %p147 = por %p145, %p146
      %p148 = scmp.ne.s32.totalorder %s137, %s138
      %p149 = scmp.eq.s32.totalorder %s19, 0
      %p150 = por %p148, %p149
      %p151 = scmp.ne.s32.totalorder %s137, %s138
      %p152 = scmp.eq.s32.totalorder %s20, 3
      %p153 = por %p151, %p152
      %p155 = scmp.ne.s32.totalorder %s138, %s154
      %p156 = scmp.eq.s32.totalorder %s20, 0
      %p157 = por %p155, %p156
      %p158 = scmp.le.s32.totalorder 1, %s14
      %p159 = scmp.lt.s32.totalorder %s14, 5
      %p160 = pnand %p158, %p159
      %p161 = pneg %p160
      // Predicated region
      $region9: #{tpu_custom_call.1} parent=5 // pred_check
        _
      $region10: #{tpu_custom_call.1} parent=5 // pred_check_branch
        %163 = sbr.rel (%p160) target = $region12
      $region11: #{tpu_custom_call.1} parent=5 // pred_region
        %s164 = ssub.s32 %s14, 1
        // Predicated region
        $region13: #{tpu_custom_call.1} parent=11 // pred_check
          %p165 = pneg %p61
        $region14: #{tpu_custom_call.1} parent=11 // pred_check_branch
          %167 = sbr.rel (%p165) target = $region16
        $region15: #{tpu_custom_call.1} parent=11 // pred_region
          _
        $region16: #{tpu_custom_call.1} parent=11 // pred_fallthru
          _
        // Predicated region
        $region17: #{tpu_custom_call.1} parent=11 // pred_check
          %p168 = pneg %p82
        $region18: #{tpu_custom_call.1} parent=11 // pred_check_branch
          %170 = sbr.rel (%p168) target = $region20
        $region19: #{tpu_custom_call.1} parent=11 // pred_region
          _
        $region20: #{tpu_custom_call.1} parent=11 // pred_fallthru
          _
        // Predicated region
        $region21: #{tpu_custom_call.1} parent=11 // pred_check
          %p171 = pneg %p103
        $region22: #{tpu_custom_call.1} parent=11 // pred_check_branch
          %173 = sbr.rel (%p171) target = $region24
        $region23: #{tpu_custom_call.1} parent=11 // pred_region
          _
        $region24: #{tpu_custom_call.1} parent=11 // pred_fallthru
          _
        // Predicated region
        $region25: #{tpu_custom_call.1} parent=11 // pred_check
          %p174 = pneg %p124
        $region26: #{tpu_custom_call.1} parent=11 // pred_check_branch
          %176 = sbr.rel (%p174) target = $region28
        $region27: #{tpu_custom_call.1} parent=11 // pred_region
          _
        $region28: #{tpu_custom_call.1} parent=11 // pred_fallthru
          _
      $region12: #{tpu_custom_call.1} parent=5 // pred_fallthru
        _
      %p177 = scmp.lt.s32.totalorder %s14, 4
      // Predicated region
      $region29: #{tpu_custom_call.1} parent=5 // pred_check
        %p178 = pneg %p177
      $region30: #{tpu_custom_call.1} parent=5 // pred_check_branch
        %180 = sbr.rel (%p178) target = $region32
      $region31: #{tpu_custom_call.1} parent=5 // pred_region
        // Predicated region
        $region33: #{tpu_custom_call.1} parent=31 // pred_check
          %p181 = pneg %p34
        $region34: #{tpu_custom_call.1} parent=31 // pred_check_branch
          %183 = sbr.rel (%p181) target = $region36
        $region35: #{tpu_custom_call.1} parent=31 // pred_region
          %s184 = smul.u32 16, %s14
          %p185 = scmp.lt.s32.totalorder %s184, 63
          %s186 = scalar_select %p185, %s184, 63
          %s187 = smul.addr %s186, 8
          %s188 = scalar_lea.vmem %s0, %s187
          %s189 = smul.u32 16, %s14
        $region36: #{tpu_custom_call.1} parent=31 // pred_fallthru
          _
      $region32: #{tpu_custom_call.1} parent=5 // pred_fallthru
        _
      %p190 = scmp.le.s32.totalorder 1, %s14
      %p191 = scmp.lt.s32.totalorder %s14, 5
      %p192 = pnand %p190, %p191
      %p193 = pneg %p192
      // Predicated region
      $region37: #{tpu_custom_call.1} parent=5 // pred_check
        _
      $region38: #{tpu_custom_call.1} parent=5 // pred_check_branch
        %195 = sbr.rel (%p192) target = $region40
      $region39: #{tpu_custom_call.1} parent=5 // pred_region
        %s196 = ssub.s32 %s14, 1
        %s197 = smul.u32 16, %s19
        %p198 = scmp.lt.s32.totalorder %s197, 63
        %s199 = scalar_select %p198, %s197, 63
        %s200 = smul.addr %s199, 8
        %s201 = scalar_lea.vmem %s0, %s200
        %p202 = pneg %p40
        %p203 = pneg %p37
        %p204 = pneg %p61
        %p205 = pneg %p58
        %p206 = pneg %p82
        %p207 = pneg %p79
        %p208 = pneg %p103
        %p209 = pneg %p100
        %p210 = pneg %p124
        %p211 = pneg %p121
        %p212 = pneg %p150
        %p213 = pneg %p147
        %s214 = sand.u32 %s137, 1
        %s215 = scalar_lea.sflag [#allocation3], %s214
        %s216 = sand.u32 %s137, 1
        %s217 = smul.addr %s216, 128
        %s218 = scalar_lea.vmem [#allocation2], %s217
        %s219 = smul.u32 16, %s19
        %p220 = scmp.lt.s32.totalorder %s219, 63
        %s221 = scalar_select %p220, %s219, 63
        %s222 = smul.addr %s221, 8
        %s223 = scalar_lea.vmem %s0, %s222
        %s224 = smul.u32 16, %s19
        %s225 = smul.u32 16, %s19
        %v227 = vld [vmem:[%s223] sm:$0xff]
        %v228 = vld [vmem:[%s223 + $0x8] sm:$0xff]
        %v229 = vld [vmem:[%s223 + $0x10] sm:$0xff]
        %v230 = vld [vmem:[%s223 + $0x18] sm:$0xff]
        %v231 = vld [vmem:[%s223 + $0x20] sm:$0xff]
        %v232 = vld [vmem:[%s223 + $0x28] sm:$0xff]
        %v233 = vld [vmem:[%s223 + $0x30] sm:$0xff]
        %v234 = vld [vmem:[%s223 + $0x38] sm:$0xff]
        %v235 = vld [vmem:[%s223 + $0x40] sm:$0xff]
        %v236 = vld [vmem:[%s223 + $0x48] sm:$0xff]
        %v237 = vld [vmem:[%s223 + $0x50] sm:$0xff]
        %v238 = vld [vmem:[%s223 + $0x58] sm:$0xff]
        %v239 = vld [vmem:[%s223 + $0x60] sm:$0xff]
        %v240 = vld [vmem:[%s223 + $0x68] sm:$0xff]
        %v241 = vld [vmem:[%s223 + $0x70] sm:$0xff]
        %v242 = vld [vmem:[%s223 + $0x78] sm:$0xff]
        %v243 = vpack.c.bf16 %v228, %v227
        %v244 = vpack.c.bf16 %v230, %v229
        %v245 = vpack.c.bf16 %v232, %v231
        %v246 = vpack.c.bf16 %v234, %v233
        %v247 = vpack.c.bf16 %v236, %v235
        %v248 = vpack.c.bf16 %v238, %v237
        %v249 = vpack.c.bf16 %v240, %v239
        %v250 = vpack.c.bf16 %v242, %v241
        %v251 = vld [vmem:[%s1] sm:$0xf]
        %v252 = vld [vmem:[%s1 + $0x4] sm:$0xf]
        %v253 = vld [vmem:[%s1 + $0x8] sm:$0xf]
        %v254 = vld [vmem:[%s1 + $0xc] sm:$0xf]
        %v255 = vld [vmem:[%s2] sm:$0x1]
        %v257 = vlaneseq
        %v258 = vshrl.u32 %v257, 7
        %v259 = vsub.s32 0, %v258
        %v260 = vrot.slane %v255, %v259
        %v266 = vunpack.c.l.b16 %v251
        %v267 = vunpack.c.l.b16 %v252
        %v268 = vunpack.c.l.b16 %v253
        %v269 = vunpack.c.l.b16 %v254
        %v270 = vpack.c.b16 %v267, %v266
        %v271 = vpack.c.b16 %v269, %v268
        %vm274 = vcmask 261120
        %v276 = vsel %vm274, %v243, 0
        %v279 = vsel %vm274, %v244, 0
        %v282 = vsel %vm274, %v245, 0
        %v285 = vsel %vm274, %v246, 0
        %v288 = vsel %vm274, %v247, 0
        %v291 = vsel %vm274, %v248, 0
        %v294 = vsel %vm274, %v249, 0
        %v297 = vsel %vm274, %v250, 0
        %299 = vmatprep.subr.bf16.mxu0 0
        %300 = vmatpush1.bf16.msra.mxu0 %v270
        %301 = vmatprep.subr.bf16.mxu0 0
        %302 = vmatpush1.bf16.msra.mxu0 %v271
        %303 = vmatprep.subr.bf16.mxu0 0
        %304 = vmatpush1.bf16.msra.mxu0 0
        %305 = vmatprep.subr.bf16.mxu0 0
        %306 = vmatpush1.bf16.msra.mxu0 0
        %307 = vmatprep.subr.bf16.mxu0 0
        %308 = vmatpush1.bf16.msra.mxu0 0
        %309 = vmatprep.subr.bf16.mxu0 0
        %310 = vmatpush1.bf16.msra.mxu0 0
        %311 = vmatprep.subr.bf16.mxu0 0
        %312 = vmatpush1.bf16.msra.mxu0 0
        %313 = vmatprep.subr.bf16.mxu0 0
        %314 = vmatpush1.bf16.msra.mxu0 0
        %315 = vmatprep.subr.bf16.mxu0 0
        %316 = vmatpush1.bf16.msra.mxu0 0
        %317 = vmatprep.subr.bf16.mxu0 0
        %318 = vmatpush1.bf16.msra.mxu0 0
        %319 = vmatprep.subr.bf16.mxu0 0
        %320 = vmatpush1.bf16.msra.mxu0 0
        %321 = vmatprep.subr.bf16.mxu0 0
        %322 = vmatpush1.bf16.msra.mxu0 0
        %323 = vmatprep.subr.bf16.mxu0 0
        %324 = vmatpush1.bf16.msra.mxu0 0
        %325 = vmatprep.subr.bf16.mxu0 0
        %326 = vmatpush1.bf16.msra.mxu0 0
        %327 = vmatprep.subr.bf16.mxu0 0
        %328 = vmatpush1.bf16.msra.mxu0 0
        %329 = vmatprep.subr.bf16.mxu0 0
        %330 = vmatpush1.bf16.msra.mxu0 0
        %331 = vmatprep.mubr.bf16.mxu0 0
        %332 = vmatmul.mubr.bf16.gmra.mrb[0].mxu0 %v276
        %v333 = vpop.f32.mrb[0].mxu0
        %v334 = vadd.f32 %v260, %v333
        %v335 = vpop.f32.mrb[0].mxu0
        %v336 = vpop.f32.mrb[0].mxu0
        %v337 = vadd.f32 %v260, %v336
        %v338 = vpop.f32.mrb[0].mxu0
        %339 = vmatprep.mubr.bf16.mxu0 0
        %340 = vmatmul.mubr.bf16.gmra.mrb[0].mxu0 %v279
        %v341 = vpop.f32.mrb[0].mxu0
        %v342 = vadd.f32 %v260, %v341
        %v343 = vpop.f32.mrb[0].mxu0
        %v344 = vpop.f32.mrb[0].mxu0
        %v345 = vadd.f32 %v260, %v344
        %v346 = vpop.f32.mrb[0].mxu0
        %347 = vmatprep.mubr.bf16.mxu0 0
        %348 = vmatmul.mubr.bf16.gmra.mrb[0].mxu0 %v282
        %v349 = vpop.f32.mrb[0].mxu0
        %v350 = vadd.f32 %v260, %v349
        %v351 = vpop.f32.mrb[0].mxu0
        %v352 = vpop.f32.mrb[0].mxu0
        %v353 = vadd.f32 %v260, %v352
        %v354 = vpop.f32.mrb[0].mxu0
        %355 = vmatprep.mubr.bf16.mxu0 0
        %356 = vmatmul.mubr.bf16.gmra.mrb[0].mxu0 %v285
        %v357 = vpop.f32.mrb[0].mxu0
        %v358 = vadd.f32 %v260, %v357
        %v359 = vpop.f32.mrb[0].mxu0
        %v360 = vpop.f32.mrb[0].mxu0
        %v361 = vadd.f32 %v260, %v360
        %v362 = vpop.f32.mrb[0].mxu0
        %363 = vmatprep.mubr.bf16.mxu0 0
        %364 = vmatmul.mubr.bf16.gmra.mrb[0].mxu0 %v288
        %v365 = vpop.f32.mrb[0].mxu0
        %v366 = vadd.f32 %v260, %v365
        %v367 = vpop.f32.mrb[0].mxu0
        %v368 = vpop.f32.mrb[0].mxu0
        %v369 = vadd.f32 %v260, %v368
        %v370 = vpop.f32.mrb[0].mxu0
        %371 = vmatprep.mubr.bf16.mxu0 0
        %372 = vmatmul.mubr.bf16.gmra.mrb[0].mxu0 %v291
        %v373 = vpop.f32.mrb[0].mxu0
        %v374 = vadd.f32 %v260, %v373
        %v375 = vpop.f32.mrb[0].mxu0
        %v376 = vpop.f32.mrb[0].mxu0
        %v377 = vadd.f32 %v260, %v376
        %v378 = vpop.f32.mrb[0].mxu0
        %379 = vmatprep.mubr.bf16.mxu0 0
        %380 = vmatmul.mubr.bf16.gmra.mrb[0].mxu0 %v294
        %v381 = vpop.f32.mrb[0].mxu0
        %v382 = vadd.f32 %v260, %v381
        %v383 = vpop.f32.mrb[0].mxu0
        %v384 = vpop.f32.mrb[0].mxu0
        %v385 = vadd.f32 %v260, %v384
        %v386 = vpop.f32.mrb[0].mxu0
        %387 = vmatprep.mubr.bf16.mxu0 0
        %388 = vmatmul.mubr.bf16.gmra.mrb[0].mxu0 %v297
        %v389 = vpop.f32.mrb[0].mxu0
        %v390 = vadd.f32 %v260, %v389
        %v391 = vpop.f32.mrb[0].mxu0
        %v392 = vpop.f32.mrb[0].mxu0
        %v393 = vadd.f32 %v260, %v392
        %v394 = vpop.f32.mrb[0].mxu0
        %395 = vdwg.mxu0
        %v396 = vmax.f32 %v334, 0.0
        %v397 = vmax.f32 %v337, 0.0
        %v398 = vmax.f32 %v342, 0.0
        %v399 = vmax.f32 %v345, 0.0
        %v400 = vmax.f32 %v350, 0.0
        %v401 = vmax.f32 %v353, 0.0
        %v402 = vmax.f32 %v358, 0.0
        %v403 = vmax.f32 %v361, 0.0
        %v404 = vmax.f32 %v366, 0.0
        %v405 = vmax.f32 %v369, 0.0
        %v406 = vmax.f32 %v374, 0.0
        %v407 = vmax.f32 %v377, 0.0
        %v408 = vmax.f32 %v382, 0.0
        %v409 = vmax.f32 %v385, 0.0
        %v410 = vmax.f32 %v390, 0.0
        %v411 = vmax.f32 %v393, 0.0
        %v412 = vpack.c.bf16 %v397, %v396
        %v413 = vpack.c.bf16 %v399, %v398
        %v414 = vpack.c.bf16 %v401, %v400
        %v415 = vpack.c.bf16 %v403, %v402
        %v416 = vpack.c.bf16 %v405, %v404
        %v417 = vpack.c.bf16 %v407, %v406
        %v418 = vpack.c.bf16 %v409, %v408
        %v419 = vpack.c.bf16 %v411, %v410
        %v420 = vld [vmem:[%s3] sm:$0xf]
        %v421 = vld [vmem:[%s3 + $0x4] sm:$0xf]
        %v422 = vld [vmem:[%s3 + $0x8] sm:$0xf]
        %v423 = vld [vmem:[%s3 + $0xc] sm:$0xf]
        %v424 = vld [vmem:[%s3 + $0x10] sm:$0xf]
        %v425 = vld [vmem:[%s3 + $0x14] sm:$0xf]
        %v426 = vld [vmem:[%s3 + $0x18] sm:$0xf]
        %v427 = vld [vmem:[%s3 + $0x1c] sm:$0xf]
        %v428 = vld [vmem:[%s3 + $0x20] sm:$0xf]
        %v429 = vld [vmem:[%s3 + $0x24] sm:$0xf]
        %v430 = vld [vmem:[%s3 + $0x28] sm:$0xf]
        %v431 = vld [vmem:[%s3 + $0x2c] sm:$0xf]
        %v432 = vld [vmem:[%s3 + $0x30] sm:$0xf]
        %v433 = vld [vmem:[%s3 + $0x34] sm:$0xf]
        %v434 = vld [vmem:[%s3 + $0x38] sm:$0xf]
        %v435 = vld [vmem:[%s3 + $0x3c] sm:$0xf]
        %v436 = vld [vmem:[%s4] sm:$0x1]
        %v438 = vlaneseq
        %v439 = vshrl.u32 %v438, 7
        %v440 = vsub.s32 0, %v439
        %v441 = vrot.slane %v436, %v440
        %v459 = vunpack.c.l.b16 %v420
        %v460 = vunpack.c.l.b16 %v421
        %v461 = vunpack.c.l.b16 %v422
        %v462 = vunpack.c.l.b16 %v423
        %v463 = vunpack.c.l.b16 %v424
        %v464 = vunpack.c.l.b16 %v425
        %v465 = vunpack.c.l.b16 %v426
        %v466 = vunpack.c.l.b16 %v427
        %v467 = vunpack.c.l.b16 %v428
        %v468 = vunpack.c.l.b16 %v429
        %v469 = vunpack.c.l.b16 %v430
        %v470 = vunpack.c.l.b16 %v431
        %v471 = vunpack.c.l.b16 %v432
        %v472 = vunpack.c.l.b16 %v433
        %v473 = vunpack.c.l.b16 %v434
        %v474 = vunpack.c.l.b16 %v435
        %v475 = vpack.c.b16 %v460, %v459
        %v476 = vpack.c.b16 %v462, %v461
        %v477 = vpack.c.b16 %v464, %v463
        %v478 = vpack.c.b16 %v466, %v465
        %v479 = vpack.c.b16 %v468, %v467
        %v480 = vpack.c.b16 %v470, %v469
        %v481 = vpack.c.b16 %v472, %v471
        %v482 = vpack.c.b16 %v474, %v473
        %491 = vmatprep.subr.bf16.mxu0 0
        %492 = vmatpush1.bf16.msra.mxu0 %v475
        %493 = vmatprep.subr.bf16.mxu0 0
        %494 = vmatpush1.bf16.msra.mxu0 %v476
        %495 = vmatprep.subr.bf16.mxu0 0
        %496 = vmatpush1.bf16.msra.mxu0 %v477
        %497 = vmatprep.subr.bf16.mxu0 0
        %498 = vmatpush1.bf16.msra.mxu0 %v478
        %499 = vmatprep.subr.bf16.mxu0 0
        %500 = vmatpush1.bf16.msra.mxu0 %v479
        %501 = vmatprep.subr.bf16.mxu0 0
        %502 = vmatpush1.bf16.msra.mxu0 %v480
        %503 = vmatprep.subr.bf16.mxu0 0
        %504 = vmatpush1.bf16.msra.mxu0 %v481
        %505 = vmatprep.subr.bf16.mxu0 0
        %506 = vmatpush1.bf16.msra.mxu0 %v482
        %507 = vmatprep.subr.bf16.mxu0 0
        %508 = vmatpush1.bf16.msra.mxu0 0
        %509 = vmatprep.subr.bf16.mxu0 0
        %510 = vmatpush1.bf16.msra.mxu0 0
        %511 = vmatprep.subr.bf16.mxu0 0
        %512 = vmatpush1.bf16.msra.mxu0 0
        %513 = vmatprep.subr.bf16.mxu0 0
        %514 = vmatpush1.bf16.msra.mxu0 0
        %515 = vmatprep.subr.bf16.mxu0 0
        %516 = vmatpush1.bf16.msra.mxu0 0
        %517 = vmatprep.subr.bf16.mxu0 0
        %518 = vmatpush1.bf16.msra.mxu0 0
        %519 = vmatprep.subr.bf16.mxu0 0
        %520 = vmatpush1.bf16.msra.mxu0 0
        %521 = vmatprep.subr.bf16.mxu0 0
        %522 = vmatpush1.bf16.msra.mxu0 0
        %523 = vmatprep.mubr.bf16.mxu0 0
        %524 = vmatmul.mubr.bf16.gmra.mrb[0].mxu0 %v412
        %v525 = vpop.f32.mrb[0].mxu0
        %v526 = vadd.f32 %v441, %v525
        %v527 = vpop.f32.mrb[0].mxu0
        %v528 = vpop.f32.mrb[0].mxu0
        %v529 = vadd.f32 %v441, %v528
        %v530 = vpop.f32.mrb[0].mxu0
        %531 = vmatprep.mubr.bf16.mxu0 0
        %532 = vmatmul.mubr.bf16.gmra.mrb[0].mxu0 %v413
        %v533 = vpop.f32.mrb[0].mxu0
        %v534 = vadd.f32 %v441, %v533
        %v535 = vpop.f32.mrb[0].mxu0
        %v536 = vpop.f32.mrb[0].mxu0
        %v537 = vadd.f32 %v441, %v536
        %v538 = vpop.f32.mrb[0].mxu0
        %539 = vmatprep.mubr.bf16.mxu0 0
        %540 = vmatmul.mubr.bf16.gmra.mrb[0].mxu0 %v414
        %v541 = vpop.f32.mrb[0].mxu0
        %v542 = vadd.f32 %v441, %v541
        %v543 = vpop.f32.mrb[0].mxu0
        %v544 = vpop.f32.mrb[0].mxu0
        %v545 = vadd.f32 %v441, %v544
        %v546 = vpop.f32.mrb[0].mxu0
        %547 = vmatprep.mubr.bf16.mxu0 0
        %548 = vmatmul.mubr.bf16.gmra.mrb[0].mxu0 %v415
        %v549 = vpop.f32.mrb[0].mxu0
        %v550 = vadd.f32 %v441, %v549
        %v551 = vpop.f32.mrb[0].mxu0
        %v552 = vpop.f32.mrb[0].mxu0
        %v553 = vadd.f32 %v441, %v552
        %v554 = vpop.f32.mrb[0].mxu0
        %555 = vmatprep.mubr.bf16.mxu0 0
        %556 = vmatmul.mubr.bf16.gmra.mrb[0].mxu0 %v416
        %v557 = vpop.f32.mrb[0].mxu0
        %v558 = vadd.f32 %v441, %v557
        %v559 = vpop.f32.mrb[0].mxu0
        %v560 = vpop.f32.mrb[0].mxu0
        %v561 = vadd.f32 %v441, %v560
        %v562 = vpop.f32.mrb[0].mxu0
        %563 = vmatprep.mubr.bf16.mxu0 0
        %564 = vmatmul.mubr.bf16.gmra.mrb[0].mxu0 %v417
        %v565 = vpop.f32.mrb[0].mxu0
        %v566 = vadd.f32 %v441, %v565
        %v567 = vpop.f32.mrb[0].mxu0
        %v568 = vpop.f32.mrb[0].mxu0
        %v569 = vadd.f32 %v441, %v568
        %v570 = vpop.f32.mrb[0].mxu0
        %571 = vmatprep.mubr.bf16.mxu0 0
        %572 = vmatmul.mubr.bf16.gmra.mrb[0].mxu0 %v418
        %v573 = vpop.f32.mrb[0].mxu0
        %v574 = vadd.f32 %v441, %v573
        %v575 = vpop.f32.mrb[0].mxu0
        %v576 = vpop.f32.mrb[0].mxu0
        %v577 = vadd.f32 %v441, %v576
        %v578 = vpop.f32.mrb[0].mxu0
        %579 = vmatprep.mubr.bf16.mxu0 0
        %580 = vmatmul.mubr.bf16.gmra.mrb[0].mxu0 %v419
        %v581 = vpop.f32.mrb[0].mxu0
        %v582 = vadd.f32 %v441, %v581
        %v583 = vpop.f32.mrb[0].mxu0
        %v584 = vpop.f32.mrb[0].mxu0
        %v585 = vadd.f32 %v441, %v584
        %v586 = vpop.f32.mrb[0].mxu0
        %587 = vdwg.mxu0
        %v588 = vlaneseq
        %v589 = vand.u32 %v588, 127
        %vm590 = vcmp.lt.s32.totalorder %v589, 8
        %vm591 = vcmp.ge.s32.totalorder %v589, 8
        %vm592 = vcmp.lt.s32.totalorder %v589, 16
        %vm593 = vmand %vm591, %vm592
        %vm594 = vcmp.ge.s32.totalorder %v589, 16
        %vm595 = vcmp.lt.s32.totalorder %v589, 24
        %vm596 = vmand %vm594, %vm595
        %vm597 = vcmp.ge.s32.totalorder %v589, 24
        %vm598 = vcmp.lt.s32.totalorder %v589, 32
        %vm599 = vmand %vm597, %vm598
        %v600 = vmul.f32 %v526, 2.0
        %v601 = vmul.f32 %v529, 2.0
        %v602 = vmul.f32 %v534, 2.0
        %v603 = vmul.f32 %v537, 2.0
        %v604 = vmul.f32 %v542, 2.0
        %v605 = vmul.f32 %v545, 2.0
        %v606 = vmul.f32 %v550, 2.0
        %v607 = vmul.f32 %v553, 2.0
        %v608 = vmul.f32 %v558, 2.0
        %v609 = vmul.f32 %v561, 2.0
        %v610 = vmul.f32 %v566, 2.0
        %v611 = vmul.f32 %v569, 2.0
        %v612 = vmul.f32 %v574, 2.0
        %v613 = vmul.f32 %v577, 2.0
        %v614 = vmul.f32 %v582, 2.0
        %v615 = vmul.f32 %v585, 2.0
        %vm616 = vcmp.gt.f32.partialorder %v600, 20.0
        %vm617 = vcmp.gt.f32.partialorder %v601, 20.0
        %vm618 = vcmp.gt.f32.partialorder %v602, 20.0
        %vm619 = vcmp.gt.f32.partialorder %v603, 20.0
        %vm620 = vcmp.gt.f32.partialorder %v604, 20.0
        %vm621 = vcmp.gt.f32.partialorder %v605, 20.0
        %vm622 = vcmp.gt.f32.partialorder %v606, 20.0
        %vm623 = vcmp.gt.f32.partialorder %v607, 20.0
        %vm624 = vcmp.gt.f32.partialorder %v608, 20.0
        %vm625 = vcmp.gt.f32.partialorder %v609, 20.0
        %vm626 = vcmp.gt.f32.partialorder %v610, 20.0
        %vm627 = vcmp.gt.f32.partialorder %v611, 20.0
        %vm628 = vcmp.gt.f32.partialorder %v612, 20.0
        %vm629 = vcmp.gt.f32.partialorder %v613, 20.0
        %vm630 = vcmp.gt.f32.partialorder %v614, 20.0
        %vm631 = vcmp.gt.f32.partialorder %v615, 20.0
        %v632 = vmin.f32 %v600, 20.0
        %v633 = vmin.f32 %v601, 20.0
        %v634 = vmin.f32 %v602, 20.0
        %v635 = vmin.f32 %v603, 20.0
        %v636 = vmin.f32 %v604, 20.0
        %v637 = vmin.f32 %v605, 20.0
        %v638 = vmin.f32 %v606, 20.0
        %v639 = vmin.f32 %v607, 20.0
        %v640 = vmin.f32 %v608, 20.0
        %v641 = vmin.f32 %v609, 20.0
        %v642 = vmin.f32 %v610, 20.0
        %v643 = vmin.f32 %v611, 20.0
        %v644 = vmin.f32 %v612, 20.0
        %v645 = vmin.f32 %v613, 20.0
        %v646 = vmin.f32 %v614, 20.0
        %v647 = vmin.f32 %v615, 20.0
        %v648 = vmul.f32 %v632, 1.442695
        %v649 = vpow.pop %v648
        %v650 = vmul.f32 %v633, 1.442695
        %v651 = vpow.pop %v650
        %v652 = vmul.f32 %v634, 1.442695
        %v653 = vpow.pop %v652
        %v654 = vmul.f32 %v635, 1.442695
        %v655 = vpow.pop %v654
        %v656 = vmul.f32 %v636, 1.442695
        %v657 = vpow.pop %v656
        %v658 = vmul.f32 %v637, 1.442695
        %v659 = vpow.pop %v658
        %v660 = vmul.f32 %v638, 1.442695
        %v661 = vpow.pop %v660
        %v662 = vmul.f32 %v639, 1.442695
        %v663 = vpow.pop %v662
        %v664 = vmul.f32 %v640, 1.442695
        %v665 = vpow.pop %v664
        %v666 = vmul.f32 %v641, 1.442695
        %v667 = vpow.pop %v666
        %v668 = vmul.f32 %v642, 1.442695
        %v669 = vpow.pop %v668
        %v670 = vmul.f32 %v643, 1.442695
        %v671 = vpow.pop %v670
        %v672 = vmul.f32 %v644, 1.442695
        %v673 = vpow.pop %v672
        %v674 = vmul.f32 %v645, 1.442695
        %v675 = vpow.pop %v674
        %v676 = vmul.f32 %v646, 1.442695
        %v677 = vpow.pop %v676
        %v678 = vmul.f32 %v647, 1.442695
        %v679 = vpow.pop %v678
        %v680 = vadd.f32 %v649, 1.0
        %v681 = vlog2.pop %v680
        %v682 = vmul.f32 %v681, 0.6931472
        %v683 = vmul.f32 -0.5, %v649
        %v684 = vadd.f32 %v683, 1.0
        %v685 = vmul.f32 %v684, %v649
        %v686 = vand.u32 2147483647, %v649
        %vm687 = vcmp.lt.f32.partialorder %v686, 0.0004427343
        %v688 = vsel %vm687, %v685, %v682
        %v689 = vadd.f32 %v651, 1.0
        %v690 = vlog2.pop %v689
        %v691 = vmul.f32 %v690, 0.6931472
        %v692 = vmul.f32 -0.5, %v651
        %v693 = vadd.f32 %v692, 1.0
        %v694 = vmul.f32 %v693, %v651
        %v695 = vand.u32 2147483647, %v651
        %vm696 = vcmp.lt.f32.partialorder %v695, 0.0004427343
        %v697 = vsel %vm696, %v694, %v691
        %v698 = vadd.f32 %v653, 1.0
        %v699 = vlog2.pop %v698
        %v700 = vmul.f32 %v699, 0.6931472
        %v701 = vmul.f32 -0.5, %v653
        %v702 = vadd.f32 %v701, 1.0
        %v703 = vmul.f32 %v702, %v653
        %v704 = vand.u32 2147483647, %v653
        %vm705 = vcmp.lt.f32.partialorder %v704, 0.0004427343
        %v706 = vsel %vm705, %v703, %v700
        %v707 = vadd.f32 %v655, 1.0
        %v708 = vlog2.pop %v707
        %v709 = vmul.f32 %v708, 0.6931472
        %v710 = vmul.f32 -0.5, %v655
        %v711 = vadd.f32 %v710, 1.0
        %v712 = vmul.f32 %v711, %v655
        %v713 = vand.u32 2147483647, %v655
        %vm714 = vcmp.lt.f32.partialorder %v713, 0.0004427343
        %v715 = vsel %vm714, %v712, %v709
        %v716 = vadd.f32 %v657, 1.0
        %v717 = vlog2.pop %v716
        %v718 = vmul.f32 %v717, 0.6931472
        %v719 = vmul.f32 -0.5, %v657
        %v720 = vadd.f32 %v719, 1.0
        %v721 = vmul.f32 %v720, %v657
        %v722 = vand.u32 2147483647, %v657
        %vm723 = vcmp.lt.f32.partialorder %v722, 0.0004427343
        %v724 = vsel %vm723, %v721, %v718
        %v725 = vadd.f32 %v659, 1.0
        %v726 = vlog2.pop %v725
        %v727 = vmul.f32 %v726, 0.6931472
        %v728 = vmul.f32 -0.5, %v659
        %v729 = vadd.f32 %v728, 1.0
        %v730 = vmul.f32 %v729, %v659
        %v731 = vand.u32 2147483647, %v659
        %vm732 = vcmp.lt.f32.partialorder %v731, 0.0004427343
        %v733 = vsel %vm732, %v730, %v727
        %v734 = vadd.f32 %v661, 1.0
        %v735 = vlog2.pop %v734
        %v736 = vmul.f32 %v735, 0.6931472
        %v737 = vmul.f32 -0.5, %v661
        %v738 = vadd.f32 %v737, 1.0
        %v739 = vmul.f32 %v738, %v661
        %v740 = vand.u32 2147483647, %v661
        %vm741 = vcmp.lt.f32.partialorder %v740, 0.0004427343
        %v742 = vsel %vm741, %v739, %v736
        %v743 = vadd.f32 %v663, 1.0
        %v744 = vlog2.pop %v743
        %v745 = vmul.f32 %v744, 0.6931472
        %v746 = vmul.f32 -0.5, %v663
        %v747 = vadd.f32 %v746, 1.0
        %v748 = vmul.f32 %v747, %v663
        %v749 = vand.u32 2147483647, %v663
        %vm750 = vcmp.lt.f32.partialorder %v749, 0.0004427343
        %v751 = vsel %vm750, %v748, %v745
        %v752 = vadd.f32 %v665, 1.0
        %v753 = vlog2.pop %v752
        %v754 = vmul.f32 %v753, 0.6931472
        %v755 = vmul.f32 -0.5, %v665
        %v756 = vadd.f32 %v755, 1.0
        %v757 = vmul.f32 %v756, %v665
        %v758 = vand.u32 2147483647, %v665
        %vm759 = vcmp.lt.f32.partialorder %v758, 0.0004427343
        %v760 = vsel %vm759, %v757, %v754
        %v761 = vadd.f32 %v667, 1.0
        %v762 = vlog2.pop %v761
        %v763 = vmul.f32 %v762, 0.6931472
        %v764 = vmul.f32 -0.5, %v667
        %v765 = vadd.f32 %v764, 1.0
        %v766 = vmul.f32 %v765, %v667
        %v767 = vand.u32 2147483647, %v667
        %vm768 = vcmp.lt.f32.partialorder %v767, 0.0004427343
        %v769 = vsel %vm768, %v766, %v763
        %v770 = vadd.f32 %v669, 1.0
        %v771 = vlog2.pop %v770
        %v772 = vmul.f32 %v771, 0.6931472
        %v773 = vmul.f32 -0.5, %v669
        %v774 = vadd.f32 %v773, 1.0
        %v775 = vmul.f32 %v774, %v669
        %v776 = vand.u32 2147483647, %v669
        %vm777 = vcmp.lt.f32.partialorder %v776, 0.0004427343
        %v778 = vsel %vm777, %v775, %v772
        %v779 = vadd.f32 %v671, 1.0
        %v780 = vlog2.pop %v779
        %v781 = vmul.f32 %v780, 0.6931472
        %v782 = vmul.f32 -0.5, %v671
        %v783 = vadd.f32 %v782, 1.0
        %v784 = vmul.f32 %v783, %v671
        %v785 = vand.u32 2147483647, %v671
        %vm786 = vcmp.lt.f32.partialorder %v785, 0.0004427343
        %v787 = vsel %vm786, %v784, %v781
        %v788 = vadd.f32 %v673, 1.0
        %v789 = vlog2.pop %v788
        %v790 = vmul.f32 %v789, 0.6931472
        %v791 = vmul.f32 -0.5, %v673
        %v792 = vadd.f32 %v791, 1.0
        %v793 = vmul.f32 %v792, %v673
        %v794 = vand.u32 2147483647, %v673
        %vm795 = vcmp.lt.f32.partialorder %v794, 0.0004427343
        %v796 = vsel %vm795, %v793, %v790
        %v797 = vadd.f32 %v675, 1.0
        %v798 = vlog2.pop %v797
        %v799 = vmul.f32 %v798, 0.6931472
        %v800 = vmul.f32 -0.5, %v675
        %v801 = vadd.f32 %v800, 1.0
        %v802 = vmul.f32 %v801, %v675
        %v803 = vand.u32 2147483647, %v675
        %vm804 = vcmp.lt.f32.partialorder %v803, 0.0004427343
        %v805 = vsel %vm804, %v802, %v799
        %v806 = vadd.f32 %v677, 1.0
        %v807 = vlog2.pop %v806
        %v808 = vmul.f32 %v807, 0.6931472
        %v809 = vmul.f32 -0.5, %v677
        %v810 = vadd.f32 %v809, 1.0
        %v811 = vmul.f32 %v810, %v677
        %v812 = vand.u32 2147483647, %v677
        %vm813 = vcmp.lt.f32.partialorder %v812, 0.0004427343
        %v814 = vsel %vm813, %v811, %v808
        %v815 = vadd.f32 %v679, 1.0
        %v816 = vlog2.pop %v815
        %v817 = vmul.f32 %v816, 0.6931472
        %v818 = vmul.f32 -0.5, %v679
        %v819 = vadd.f32 %v818, 1.0
        %v820 = vmul.f32 %v819, %v679
        %v821 = vand.u32 2147483647, %v679
        %vm822 = vcmp.lt.f32.partialorder %v821, 0.0004427343
        %v823 = vsel %vm822, %v820, %v817
        %v824 = vmul.f32 %v688, 0.5
        %v825 = vmul.f32 %v697, 0.5
        %v826 = vmul.f32 %v706, 0.5
        %v827 = vmul.f32 %v715, 0.5
        %v828 = vmul.f32 %v724, 0.5
        %v829 = vmul.f32 %v733, 0.5
        %v830 = vmul.f32 %v742, 0.5
        %v831 = vmul.f32 %v751, 0.5
        %v832 = vmul.f32 %v760, 0.5
        %v833 = vmul.f32 %v769, 0.5
        %v834 = vmul.f32 %v778, 0.5
        %v835 = vmul.f32 %v787, 0.5
        %v836 = vmul.f32 %v796, 0.5
        %v837 = vmul.f32 %v805, 0.5
        %v838 = vmul.f32 %v814, 0.5
        %v839 = vmul.f32 %v823, 0.5
        %v840 = vsel %vm616, %v526, %v824
        %v841 = vsel %vm617, %v529, %v825
        %v842 = vsel %vm618, %v534, %v826
        %v843 = vsel %vm619, %v537, %v827
        %v844 = vsel %vm620, %v542, %v828
        %v845 = vsel %vm621, %v545, %v829
        %v846 = vsel %vm622, %v550, %v830
        %v847 = vsel %vm623, %v553, %v831
        %v848 = vsel %vm624, %v558, %v832
        %v849 = vsel %vm625, %v561, %v833
        %v850 = vsel %vm626, %v566, %v834
        %v851 = vsel %vm627, %v569, %v835
        %v852 = vsel %vm628, %v574, %v836
        %v853 = vsel %vm629, %v577, %v837
        %v854 = vsel %vm630, %v582, %v838
        %v855 = vsel %vm631, %v585, %v839
        %v856 = vadd.f32 %v840, 1e-05
        %v857 = vadd.f32 %v841, 1e-05
        %v858 = vadd.f32 %v842, 1e-05
        %v859 = vadd.f32 %v843, 1e-05
        %v860 = vadd.f32 %v844, 1e-05
        %v861 = vadd.f32 %v845, 1e-05
        %v862 = vadd.f32 %v846, 1e-05
        %v863 = vadd.f32 %v847, 1e-05
        %v864 = vadd.f32 %v848, 1e-05
        %v865 = vadd.f32 %v849, 1e-05
        %v866 = vadd.f32 %v850, 1e-05
        %v867 = vadd.f32 %v851, 1e-05
        %v868 = vadd.f32 %v852, 1e-05
        %v869 = vadd.f32 %v853, 1e-05
        %v870 = vadd.f32 %v854, 1e-05
        %v871 = vadd.f32 %v855, 1e-05
        %v872 = vxor.u32 %v526, 2147483648
        %v873 = vxor.u32 %v529, 2147483648
        %v874 = vxor.u32 %v534, 2147483648
        %v875 = vxor.u32 %v537, 2147483648
        %v876 = vxor.u32 %v542, 2147483648
        %v877 = vxor.u32 %v545, 2147483648
        %v878 = vxor.u32 %v550, 2147483648
        %v879 = vxor.u32 %v553, 2147483648
        %v880 = vxor.u32 %v558, 2147483648
        %v881 = vxor.u32 %v561, 2147483648
        %v882 = vxor.u32 %v566, 2147483648
        %v883 = vxor.u32 %v569, 2147483648
        %v884 = vxor.u32 %v574, 2147483648
        %v885 = vxor.u32 %v577, 2147483648
        %v886 = vxor.u32 %v582, 2147483648
        %v887 = vxor.u32 %v585, 2147483648
        %v888 = vmul.f32 %v872, 1.442695
        %v889 = vpow.pop %v888
        %v890 = vmul.f32 %v873, 1.442695
        %v891 = vpow.pop %v890
        %v892 = vmul.f32 %v874, 1.442695
        %v893 = vpow.pop %v892
        %v894 = vmul.f32 %v875, 1.442695
        %v895 = vpow.pop %v894
        %v896 = vmul.f32 %v876, 1.442695
        %v897 = vpow.pop %v896
        %v898 = vmul.f32 %v877, 1.442695
        %v899 = vpow.pop %v898
        %v900 = vmul.f32 %v878, 1.442695
        %v901 = vpow.pop %v900
        %v902 = vmul.f32 %v879, 1.442695
        %v903 = vpow.pop %v902
        %v904 = vmul.f32 %v880, 1.442695
        %v905 = vpow.pop %v904
        %v906 = vmul.f32 %v881, 1.442695
        %v907 = vpow.pop %v906
        %v908 = vmul.f32 %v882, 1.442695
        %v909 = vpow.pop %v908
        %v910 = vmul.f32 %v883, 1.442695
        %v911 = vpow.pop %v910
        %v912 = vmul.f32 %v884, 1.442695
        %v913 = vpow.pop %v912
        %v914 = vmul.f32 %v885, 1.442695
        %v915 = vpow.pop %v914
        %v916 = vmul.f32 %v886, 1.442695
        %v917 = vpow.pop %v916
        %v918 = vmul.f32 %v887, 1.442695
        %v919 = vpow.pop %v918
        %v920 = vadd.f32 %v889, 1.0
        %v921 = vadd.f32 %v891, 1.0
        %v922 = vadd.f32 %v893, 1.0
        %v923 = vadd.f32 %v895, 1.0
        %v924 = vadd.f32 %v897, 1.0
        %v925 = vadd.f32 %v899, 1.0
        %v926 = vadd.f32 %v901, 1.0
        %v927 = vadd.f32 %v903, 1.0
        %v928 = vadd.f32 %v905, 1.0
        %v929 = vadd.f32 %v907, 1.0
        %v930 = vadd.f32 %v909, 1.0
        %v931 = vadd.f32 %v911, 1.0
        %v932 = vadd.f32 %v913, 1.0
        %v933 = vadd.f32 %v915, 1.0
        %v934 = vadd.f32 %v917, 1.0
        %v935 = vadd.f32 %v919, 1.0
        %v936 = vrcp.pop %v920
        %v937 = vmul.f32 1.0, %v936
        %v938 = vrcp.pop %v921
        %v939 = vmul.f32 1.0, %v938
        %v940 = vrcp.pop %v922
        %v941 = vmul.f32 1.0, %v940
        %v942 = vrcp.pop %v923
        %v943 = vmul.f32 1.0, %v942
        %v944 = vrcp.pop %v924
        %v945 = vmul.f32 1.0, %v944
        %v946 = vrcp.pop %v925
        %v947 = vmul.f32 1.0, %v946
        %v948 = vrcp.pop %v926
        %v949 = vmul.f32 1.0, %v948
        %v950 = vrcp.pop %v927
        %v951 = vmul.f32 1.0, %v950
        %v952 = vrcp.pop %v928
        %v953 = vmul.f32 1.0, %v952
        %v954 = vrcp.pop %v929
        %v955 = vmul.f32 1.0, %v954
        %v956 = vrcp.pop %v930
        %v957 = vmul.f32 1.0, %v956
        %v958 = vrcp.pop %v931
        %v959 = vmul.f32 1.0, %v958
        %v960 = vrcp.pop %v932
        %v961 = vmul.f32 1.0, %v960
        %v962 = vrcp.pop %v933
        %v963 = vmul.f32 1.0, %v962
        %v964 = vrcp.pop %v934
        %v965 = vmul.f32 1.0, %v964
        %v966 = vrcp.pop %v935
        %v967 = vmul.f32 1.0, %v966
        %v968 = vmul.f32 %v937, 0.99999
        %v969 = vmul.f32 %v939, 0.99999
        %v970 = vmul.f32 %v941, 0.99999
        %v971 = vmul.f32 %v943, 0.99999
        %v972 = vmul.f32 %v945, 0.99999
        %v973 = vmul.f32 %v947, 0.99999
        %v974 = vmul.f32 %v949, 0.99999
        %v975 = vmul.f32 %v951, 0.99999
        %v976 = vmul.f32 %v953, 0.99999
        %v977 = vmul.f32 %v955, 0.99999
        %v978 = vmul.f32 %v957, 0.99999
        %v979 = vmul.f32 %v959, 0.99999
        %v980 = vmul.f32 %v961, 0.99999
        %v981 = vmul.f32 %v963, 0.99999
        %v982 = vmul.f32 %v965, 0.99999
        %v983 = vmul.f32 %v967, 0.99999
        %v984 = vadd.f32 %v968, 1e-05
        %v985 = vadd.f32 %v969, 1e-05
        %v986 = vadd.f32 %v970, 1e-05
        %v987 = vadd.f32 %v971, 1e-05
        %v988 = vadd.f32 %v972, 1e-05
        %v989 = vadd.f32 %v973, 1e-05
        %v990 = vadd.f32 %v974, 1e-05
        %v991 = vadd.f32 %v975, 1e-05
        %v992 = vadd.f32 %v976, 1e-05
        %v993 = vadd.f32 %v977, 1e-05
        %v994 = vadd.f32 %v978, 1e-05
        %v995 = vadd.f32 %v979, 1e-05
        %v996 = vadd.f32 %v980, 1e-05
        %v997 = vadd.f32 %v981, 1e-05
        %v998 = vadd.f32 %v982, 1e-05
        %v999 = vadd.f32 %v983, 1e-05
        %v1000 = vsel %vm599, %v526, -1e+30
        %v1001 = vsel %vm599, %v529, -1e+30
        %v1002 = vsel %vm599, %v534, -1e+30
        %v1003 = vsel %vm599, %v537, -1e+30
        %v1004 = vsel %vm599, %v542, -1e+30
        %v1005 = vsel %vm599, %v545, -1e+30
        %v1006 = vsel %vm599, %v550, -1e+30
        %v1007 = vsel %vm599, %v553, -1e+30
        %v1008 = vsel %vm599, %v558, -1e+30
        %v1009 = vsel %vm599, %v561, -1e+30
        %v1010 = vsel %vm599, %v566, -1e+30
        %v1011 = vsel %vm599, %v569, -1e+30
        %v1012 = vsel %vm599, %v574, -1e+30
        %v1013 = vsel %vm599, %v577, -1e+30
        %v1014 = vsel %vm599, %v582, -1e+30
        %v1015 = vsel %vm599, %v585, -1e+30
        %1016 = vmax.xlane.f32.xlu0 %v1000
        %v1017 = vpop.xlane.xlu0 %1016
        %1018 = vmax.xlane.f32.xlu0 %v1001
        %v1019 = vpop.xlane.xlu0 %1018
        %1020 = vmax.xlane.f32.xlu0 %v1002
        %v1021 = vpop.xlane.xlu0 %1020
        %1022 = vmax.xlane.f32.xlu0 %v1003
        %v1023 = vpop.xlane.xlu0 %1022
        %1024 = vmax.xlane.f32.xlu0 %v1004
        %v1025 = vpop.xlane.xlu0 %1024
        %1026 = vmax.xlane.f32.xlu0 %v1005
        %v1027 = vpop.xlane.xlu0 %1026
        %1028 = vmax.xlane.f32.xlu0 %v1006
        %v1029 = vpop.xlane.xlu0 %1028
        %1030 = vmax.xlane.f32.xlu0 %v1007
        %v1031 = vpop.xlane.xlu0 %1030
        %1032 = vmax.xlane.f32.xlu0 %v1008
        %v1033 = vpop.xlane.xlu0 %1032
        %1034 = vmax.xlane.f32.xlu0 %v1009
        %v1035 = vpop.xlane.xlu0 %1034
        %1036 = vmax.xlane.f32.xlu0 %v1010
        %v1037 = vpop.xlane.xlu0 %1036
        %1038 = vmax.xlane.f32.xlu0 %v1011
        %v1039 = vpop.xlane.xlu0 %1038
        %1040 = vmax.xlane.f32.xlu0 %v1012
        %v1041 = vpop.xlane.xlu0 %1040
        %1042 = vmax.xlane.f32.xlu0 %v1013
        %v1043 = vpop.xlane.xlu0 %1042
        %1044 = vmax.xlane.f32.xlu0 %v1014
        %v1045 = vpop.xlane.xlu0 %1044
        %1046 = vmax.xlane.f32.xlu0 %v1015
        %v1047 = vpop.xlane.xlu0 %1046
        %v1048 = vsub.f32 %v1000, %v1017
        %v1049 = vsub.f32 %v1001, %v1019
        %v1050 = vsub.f32 %v1002, %v1021
        %v1051 = vsub.f32 %v1003, %v1023
        %v1052 = vsub.f32 %v1004, %v1025
        %v1053 = vsub.f32 %v1005, %v1027
        %v1054 = vsub.f32 %v1006, %v1029
        %v1055 = vsub.f32 %v1007, %v1031
        %v1056 = vsub.f32 %v1008, %v1033
        %v1057 = vsub.f32 %v1009, %v1035
        %v1058 = vsub.f32 %v1010, %v1037
        %v1059 = vsub.f32 %v1011, %v1039
        %v1060 = vsub.f32 %v1012, %v1041
        %v1061 = vsub.f32 %v1013, %v1043
        %v1062 = vsub.f32 %v1014, %v1045
        %v1063 = vsub.f32 %v1015, %v1047
        %v1064 = vmul.f32 %v1048, 1.442695
        %v1065 = vpow.pop %v1064
        %v1066 = vmul.f32 %v1049, 1.442695
        %v1067 = vpow.pop %v1066
        %v1068 = vmul.f32 %v1050, 1.442695
        %v1069 = vpow.pop %v1068
        %v1070 = vmul.f32 %v1051, 1.442695
        %v1071 = vpow.pop %v1070
        %v1072 = vmul.f32 %v1052, 1.442695
        %v1073 = vpow.pop %v1072
        %v1074 = vmul.f32 %v1053, 1.442695
        %v1075 = vpow.pop %v1074
        %v1076 = vmul.f32 %v1054, 1.442695
        %v1077 = vpow.pop %v1076
        %v1078 = vmul.f32 %v1055, 1.442695
        %v1079 = vpow.pop %v1078
        %v1080 = vmul.f32 %v1056, 1.442695
        %v1081 = vpow.pop %v1080
        %v1082 = vmul.f32 %v1057, 1.442695
        %v1083 = vpow.pop %v1082
        %v1084 = vmul.f32 %v1058, 1.442695
        %v1085 = vpow.pop %v1084
        %v1086 = vmul.f32 %v1059, 1.442695
        %v1087 = vpow.pop %v1086
        %v1088 = vmul.f32 %v1060, 1.442695
        %v1089 = vpow.pop %v1088
        %v1090 = vmul.f32 %v1061, 1.442695
        %v1091 = vpow.pop %v1090
        %v1092 = vmul.f32 %v1062, 1.442695
        %v1093 = vpow.pop %v1092
        %v1094 = vmul.f32 %v1063, 1.442695
        %v1095 = vpow.pop %v1094
        %1096 = vadd.xlane.f32.xlu0 %v1065
        %v1097 = vpop.xlane.xlu0 %1096
        %1098 = vadd.xlane.f32.xlu0 %v1067
        %v1099 = vpop.xlane.xlu0 %1098
        %1100 = vadd.xlane.f32.xlu0 %v1069
        %v1101 = vpop.xlane.xlu0 %1100
        %1102 = vadd.xlane.f32.xlu0 %v1071
        %v1103 = vpop.xlane.xlu0 %1102
        %1104 = vadd.xlane.f32.xlu0 %v1073
        %v1105 = vpop.xlane.xlu0 %1104
        %1106 = vadd.xlane.f32.xlu0 %v1075
        %v1107 = vpop.xlane.xlu0 %1106
        %1108 = vadd.xlane.f32.xlu0 %v1077
        %v1109 = vpop.xlane.xlu0 %1108
        %1110 = vadd.xlane.f32.xlu0 %v1079
        %v1111 = vpop.xlane.xlu0 %1110
        %1112 = vadd.xlane.f32.xlu0 %v1081
        %v1113 = vpop.xlane.xlu0 %1112
        %1114 = vadd.xlane.f32.xlu0 %v1083
        %v1115 = vpop.xlane.xlu0 %1114
        %1116 = vadd.xlane.f32.xlu0 %v1085
        %v1117 = vpop.xlane.xlu0 %1116
        %1118 = vadd.xlane.f32.xlu0 %v1087
        %v1119 = vpop.xlane.xlu0 %1118
        %1120 = vadd.xlane.f32.xlu0 %v1089
        %v1121 = vpop.xlane.xlu0 %1120
        %1122 = vadd.xlane.f32.xlu0 %v1091
        %v1123 = vpop.xlane.xlu0 %1122
        %1124 = vadd.xlane.f32.xlu0 %v1093
        %v1125 = vpop.xlane.xlu0 %1124
        %1126 = vadd.xlane.f32.xlu0 %v1095
        %v1127 = vpop.xlane.xlu0 %1126
        %v1128 = vrcp.pop %v1097
        %v1129 = vrcp.pop %v1099
        %v1130 = vrcp.pop %v1101
        %v1131 = vrcp.pop %v1103
        %v1132 = vrcp.pop %v1105
        %v1133 = vrcp.pop %v1107
        %v1134 = vrcp.pop %v1109
        %v1135 = vrcp.pop %v1111
        %v1136 = vrcp.pop %v1113
        %v1137 = vrcp.pop %v1115
        %v1138 = vrcp.pop %v1117
        %v1139 = vrcp.pop %v1119
        %v1140 = vrcp.pop %v1121
        %v1141 = vrcp.pop %v1123
        %v1142 = vrcp.pop %v1125
        %v1143 = vrcp.pop %v1127
        %v1144 = vmul.f32 %v1065, %v1128
        %v1145 = vmul.f32 %v1067, %v1129
        %v1146 = vmul.f32 %v1069, %v1130
        %v1147 = vmul.f32 %v1071, %v1131
        %v1148 = vmul.f32 %v1073, %v1132
        %v1149 = vmul.f32 %v1075, %v1133
        %v1150 = vmul.f32 %v1077, %v1134
        %v1151 = vmul.f32 %v1079, %v1135
        %v1152 = vmul.f32 %v1081, %v1136
        %v1153 = vmul.f32 %v1083, %v1137
        %v1154 = vmul.f32 %v1085, %v1138
        %v1155 = vmul.f32 %v1087, %v1139
        %v1156 = vmul.f32 %v1089, %v1140
        %v1157 = vmul.f32 %v1091, %v1141
        %v1158 = vmul.f32 %v1093, %v1142
        %v1159 = vmul.f32 %v1095, %v1143
        %v1160 = vmul.f32 %v1144, 0.99999
        %v1161 = vmul.f32 %v1145, 0.99999
        %v1162 = vmul.f32 %v1146, 0.99999
        %v1163 = vmul.f32 %v1147, 0.99999
        %v1164 = vmul.f32 %v1148, 0.99999
        %v1165 = vmul.f32 %v1149, 0.99999
        %v1166 = vmul.f32 %v1150, 0.99999
        %v1167 = vmul.f32 %v1151, 0.99999
        %v1168 = vmul.f32 %v1152, 0.99999
        %v1169 = vmul.f32 %v1153, 0.99999
        %v1170 = vmul.f32 %v1154, 0.99999
        %v1171 = vmul.f32 %v1155, 0.99999
        %v1172 = vmul.f32 %v1156, 0.99999
        %v1173 = vmul.f32 %v1157, 0.99999
        %v1174 = vmul.f32 %v1158, 0.99999
        %v1175 = vmul.f32 %v1159, 0.99999
        %v1176 = vadd.f32 %v1160, 1e-05
        %v1177 = vadd.f32 %v1161, 1e-05
        %v1178 = vadd.f32 %v1162, 1e-05
        %v1179 = vadd.f32 %v1163, 1e-05
        %v1180 = vadd.f32 %v1164, 1e-05
        %v1181 = vadd.f32 %v1165, 1e-05
        %v1182 = vadd.f32 %v1166, 1e-05
        %v1183 = vadd.f32 %v1167, 1e-05
        %v1184 = vadd.f32 %v1168, 1e-05
        %v1185 = vadd.f32 %v1169, 1e-05
        %v1186 = vadd.f32 %v1170, 1e-05
        %v1187 = vadd.f32 %v1171, 1e-05
        %v1188 = vadd.f32 %v1172, 1e-05
        %v1189 = vadd.f32 %v1173, 1e-05
        %v1190 = vadd.f32 %v1174, 1e-05
        %v1191 = vadd.f32 %v1175, 1e-05
        %v1192 = vsel %vm599, %v1176, 0.0
        %v1193 = vsel %vm599, %v1177, 0.0
        %v1194 = vsel %vm599, %v1178, 0.0
        %v1195 = vsel %vm599, %v1179, 0.0
        %v1196 = vsel %vm599, %v1180, 0.0
        %v1197 = vsel %vm599, %v1181, 0.0
        %v1198 = vsel %vm599, %v1182, 0.0
        %v1199 = vsel %vm599, %v1183, 0.0
        %v1200 = vsel %vm599, %v1184, 0.0
        %v1201 = vsel %vm599, %v1185, 0.0
        %v1202 = vsel %vm599, %v1186, 0.0
        %v1203 = vsel %vm599, %v1187, 0.0
        %v1204 = vsel %vm599, %v1188, 0.0
        %v1205 = vsel %vm599, %v1189, 0.0
        %v1206 = vsel %vm599, %v1190, 0.0
        %v1207 = vsel %vm599, %v1191, 0.0
        %v1208 = vsel %vm596, %v984, %v1192
        %v1209 = vsel %vm596, %v985, %v1193
        %v1210 = vsel %vm596, %v986, %v1194
        %v1211 = vsel %vm596, %v987, %v1195
        %v1212 = vsel %vm596, %v988, %v1196
        %v1213 = vsel %vm596, %v989, %v1197
        %v1214 = vsel %vm596, %v990, %v1198
        %v1215 = vsel %vm596, %v991, %v1199
        %v1216 = vsel %vm596, %v992, %v1200
        %v1217 = vsel %vm596, %v993, %v1201
        %v1218 = vsel %vm596, %v994, %v1202
        %v1219 = vsel %vm596, %v995, %v1203
        %v1220 = vsel %vm596, %v996, %v1204
        %v1221 = vsel %vm596, %v997, %v1205
        %v1222 = vsel %vm596, %v998, %v1206
        %v1223 = vsel %vm596, %v999, %v1207
        %v1224 = vsel %vm593, %v856, %v1208
        %v1225 = vsel %vm593, %v857, %v1209
        %v1226 = vsel %vm593, %v858, %v1210
        %v1227 = vsel %vm593, %v859, %v1211
        %v1228 = vsel %vm593, %v860, %v1212
        %v1229 = vsel %vm593, %v861, %v1213
        %v1230 = vsel %vm593, %v862, %v1214
        %v1231 = vsel %vm593, %v863, %v1215
        %v1232 = vsel %vm593, %v864, %v1216
        %v1233 = vsel %vm593, %v865, %v1217
        %v1234 = vsel %vm593, %v866, %v1218
        %v1235 = vsel %vm593, %v867, %v1219
        %v1236 = vsel %vm593, %v868, %v1220
        %v1237 = vsel %vm593, %v869, %v1221
        %v1238 = vsel %vm593, %v870, %v1222
        %v1239 = vsel %vm593, %v871, %v1223
        %v1240 = vsel %vm590, %v526, %v1224
        %v1241 = vsel %vm590, %v529, %v1225
        %v1242 = vsel %vm590, %v534, %v1226
        %v1243 = vsel %vm590, %v537, %v1227
        %v1244 = vsel %vm590, %v542, %v1228
        %v1245 = vsel %vm590, %v545, %v1229
        %v1246 = vsel %vm590, %v550, %v1230
        %v1247 = vsel %vm590, %v553, %v1231
        %v1248 = vsel %vm590, %v558, %v1232
        %v1249 = vsel %vm590, %v561, %v1233
        %v1250 = vsel %vm590, %v566, %v1234
        %v1251 = vsel %vm590, %v569, %v1235
        %v1252 = vsel %vm590, %v574, %v1236
        %v1253 = vsel %vm590, %v577, %v1237
        %v1254 = vsel %vm590, %v582, %v1238
        %v1255 = vsel %vm590, %v585, %v1239
        %1256 = vst [vmem:[%s218] sm:$0xff] %v1240
        %1257 = vst [vmem:[%s218 + $0x8] sm:$0xff] %v1241
        %1258 = vst [vmem:[%s218 + $0x10] sm:$0xff] %v1242
        %1259 = vst [vmem:[%s218 + $0x18] sm:$0xff] %v1243
        %1260 = vst [vmem:[%s218 + $0x20] sm:$0xff] %v1244
        %1261 = vst [vmem:[%s218 + $0x28] sm:$0xff] %v1245
        %1262 = vst [vmem:[%s218 + $0x30] sm:$0xff] %v1246
        %1263 = vst [vmem:[%s218 + $0x38] sm:$0xff] %v1247
        %1264 = vst [vmem:[%s218 + $0x40] sm:$0xff] %v1248
        %1265 = vst [vmem:[%s218 + $0x48] sm:$0xff] %v1249
        %1266 = vst [vmem:[%s218 + $0x50] sm:$0xff] %v1250
        %1267 = vst [vmem:[%s218 + $0x58] sm:$0xff] %v1251
        %1268 = vst [vmem:[%s218 + $0x60] sm:$0xff] %v1252
        %1269 = vst [vmem:[%s218 + $0x68] sm:$0xff] %v1253
        %1270 = vst [vmem:[%s218 + $0x70] sm:$0xff] %v1254
        %1271 = vst [vmem:[%s218 + $0x78] sm:$0xff] %v1255
        %s1272 = sand.u32 %s137, 1
        %s1273 = scalar_lea.sflag [#allocation3], %s1272
        %s1274 = sand.u32 %s137, 1
        %s1275 = smul.addr %s1274, 128
        %s1276 = scalar_lea.vmem [#allocation2], %s1275
        // Predicated region
        $region41: #{tpu_custom_call.1} parent=39 // pred_check
          %p1277 = pneg %p147
        $region42: #{tpu_custom_call.1} parent=39 // pred_check_branch
          %1279 = sbr.rel (%p1277) target = $region44
        $region43: #{tpu_custom_call.1} parent=39 // pred_region
          %s1280 = smul.u32 16, %s19
          %s1282 = ssub.s32 2048, 2048
          %1283 = vsyncadd %s1273, %s1282
          %s1284 = smul.addr %s1280, 128
          %s1285 = scalar_lea.hbm %s5, %s1284
          %s1286 = sshll.u32 %s1276, 4
          %s1287 = int_to_ptr.vmem [resolvable:$true] %s1286
          %1292 = dma.vmem_to_hbm [thread:$0]  %s1287, 2048, %s1285, %s1273, 128, 128, 8
        $region44: #{tpu_custom_call.1} parent=39 // pred_fallthru
          _
      $region40: #{tpu_custom_call.1} parent=5 // pred_fallthru
        _
      %p1293 = scmp.le.s32.totalorder 2, %s14
      // Predicated region
      $region45: #{tpu_custom_call.1} parent=5 // pred_check
        %p1294 = pneg %p1293
      $region46: #{tpu_custom_call.1} parent=5 // pred_check_branch
        %1296 = sbr.rel (%p1294) target = $region48
      $region47: #{tpu_custom_call.1} parent=5 // pred_region
        %s1297 = ssub.s32 %s14, 2
        // Predicated region
        $region49: #{tpu_custom_call.1} parent=47 // pred_check
          %p1298 = pneg %p153
        $region50: #{tpu_custom_call.1} parent=47 // pred_check_branch
          %1300 = sbr.rel (%p1298) target = $region52
        $region51: #{tpu_custom_call.1} parent=47 // pred_region
          %s1301 = sand.u32 %s138, 1
          %s1302 = scalar_lea.sflag [#allocation3], %s1301
          %s1303 = sand.u32 %s138, 1
          %s1304 = smul.addr %s1303, 128
          %s1305 = scalar_lea.vmem [#allocation2], %s1304
          %1306 = dma.done %s1302, 2048
        $region52: #{tpu_custom_call.1} parent=47 // pred_fallthru
          _
      $region48: #{tpu_custom_call.1} parent=5 // pred_fallthru
        _
    $region6: #{tpu_custom_call.1} parent=1 // loop_footer
      %s18 = sadd.s32 1, %s14
    $region7: #{tpu_custom_call.1} parent=1 // loop_footer_branch
      %13 = sbr.rel target = $region3
    $region8: #{tpu_custom_call.1} parent=1 // loop_exit
      _
    %1307 = vsyncpa [#allocation3], 1
    %s1308 = scalar_lea.sflag [#allocation3], 1
    %1309 = vsyncpa %s1308, 1

</llo_original>
